<compile_context>
chip_gen: v7x
topology: tpu7x:2x2x1
jax: 0.10.0
libtpu: 0.0.40
codegen_flags: <defaults>
</compile_context>

<pallas_src>
import functools
import math

import jax
import jax.numpy as jnp
from jax import lax
from jax.experimental import pallas as pl
from jax.experimental.pallas import tpu as pltpu

_EPS = 1e-12
_PALLAS_MIN_ELEMS = 1 << 16     # below this a pallas launch costs more than it saves


def _round_up(x, m):
    return (x + m - 1) // m * m


def _vmem_budget():
    """Generation-aware tile / scoped-VMEM budget (v7x: 64 MiB, v5e/v6e: 128 MiB)."""
    vmem_cap = 64 << 20
    try:
        vmem_cap = int(pltpu.get_tpu_info().vmem_capacity_bytes)
    except Exception:
        pass
    if vmem_cap <= (64 << 20) + (1 << 20):       # v7x-class TensorCore
        tile_bytes_f32 = 4 << 20                 # per input, f32-widened working set
        vmem_limit = min(48 << 20, vmem_cap * 3 // 4)
    else:                                        # v5e / v6e (128 MiB VMEM)
        tile_bytes_f32 = 6 << 20
        vmem_limit = 64 << 20
    return tile_bytes_f32, vmem_limit


# ----------------------------- Pallas kernel ------------------------------ #

def _ccc_moments_kernel(shift_ref, p_ref, t_ref, out_ref, *,
                        groups, n_steps, tile_rows, rows_valid, needs_mask):
    """Accumulate per-lane moment sums for one packed-row tile.

    shift_ref : (1, W)  f32   common per-lane shift (CCC is shift invariant)
    p_ref     : (TR, W)       input tile (f32 or bf16)
    t_ref     : (TR, W)       input tile
    out_ref   : (1, 40, W) f32 resident accumulator:
                rows  0: 8 sum(p)    8:16 sum(t)   16:24 sum(p*p)
                     24:32 sum(t*t) 32:40 sum(p*t)
    """
    k = pl.program_id(1)

    @pl.when(k == 0)
    def _():
        out_ref[...] = jnp.zeros_like(out_ref)

    sh = shift_ref[...]                              # (1, W) f32
    p = p_ref[...].astype(jnp.float32) - sh          # (TR, W)
    t = t_ref[...].astype(jnp.float32) - sh
    w = p.shape[-1]

    if needs_mask:
        # Global packed-row index of each tile row; rows >= rows_valid are the
        # ragged tail (partial / clamped blocks) and must contribute zero.
        base = (pl.program_id(0) * n_steps + k) * tile_rows
        row = base + lax.broadcasted_iota(jnp.int32, (tile_rows, 1), 0)
        valid = row < rows_valid                     # (TR, 1), lane-broadcast
        p = jnp.where(valid, p, 0.0)
        t = jnp.where(valid, t, 0.0)

    def fold(x):
        # (TR, W) -> (G, 8, W) -> (8, W): whole-vreg VPU adds, no XLU reduce.
        # TODO(synk): if a bundle dump shows the VALU slot binding (v7x / bf16),
        # offload this fold to the idle MXU via a ones(8, TR) @ x matmul.
        return jnp.sum(x.reshape(groups, 8, w), axis=0)

    out_ref[0, 0:8, :] += fold(p)
    out_ref[0, 8:16, :] += fold(t)
    out_ref[0, 16:24, :] += fold(p * p)
    out_ref[0, 24:32, :] += fold(t * t)
    out_ref[0, 32:40, :] += fold(p * t)


def ccc_losses_pallas(preds, targets):
    """Per-target CCC losses (1 - ccc), shape (T,), f32.  Inputs (..., T)."""
    preds = jnp.asarray(preds)
    targets = jnp.asarray(targets)
    assert preds.shape == targets.shape
    if preds.ndim > 2:
        preds = preds.reshape(-1, preds.shape[-1])
        targets = targets.reshape(-1, targets.shape[-1])
    n, t_dim = preds.shape
    assert n > 0

    # ---- lane-dense repacking: (N, T) -> (rows, W), W a multiple of 128 ----
    w = math.lcm(t_dim, 128)
    r = w // t_dim

    # Common per-target shift, rounded so it is exactly representable in BOTH
    # input dtypes; padded rows filled with it contribute exactly zero.
    shift = targets[0].astype(preds.dtype).astype(targets.dtype).astype(jnp.float32)
    shift_lanes = jnp.tile(shift, r)[None, :]            # (1, W) f32

    # Only pad to reshape granularity (< r rows).  The ragged packed-row tail
    # is handled by in-kernel masking, not by copying padded inputs to HBM.
    n_pad = _round_up(n, r)
    if n_pad > n:
        fill = jnp.broadcast_to(shift, (n_pad - n, t_dim))
        preds = jnp.concatenate([preds, fill.astype(preds.dtype)], axis=0)
        targets = jnp.concatenate([targets, fill.astype(targets.dtype)], axis=0)
    rows = n_pad // r                                    # == cdiv(n, r)
    p_packed = preds.reshape(rows, w)                    # free bitcast reshape
    t_packed = targets.reshape(rows, w)

    # ---- generation-aware tile sizing --------------------------------------
    tile_bytes_f32, vmem_limit = _vmem_budget()
    tile_rows = max(16, (tile_bytes_f32 // (w * 4)) // 16 * 16)   # mult of 16
    tile_rows = min(tile_rows, max(16, _round_up(rows, 16)))
    # TODO(synk): on v7x use pltpu.CORE_PARALLEL (or pl.core_map over a
    # tensorcore mesh) for this axis so both TensorCores stream half the rows.
    n_chunks = 2 if rows >= 2 * tile_rows else 1
    n_steps = pl.cdiv(rows, tile_rows * n_chunks)
    rows_total = n_chunks * n_steps * tile_rows
    last_block = pl.cdiv(rows, tile_rows) - 1            # clamp fully-OOB blocks

    kernel = functools.partial(
        _ccc_moments_kernel, groups=tile_rows // 8, n_steps=n_steps,
        tile_rows=tile_rows, rows_valid=rows, needs_mask=rows_total > rows)

    def row_map(c, k):
        # Clamp so no block starts past the array end; clamped (duplicate)
        # blocks are fully masked in-kernel via the global row index.
        return (jnp.minimum(c * n_steps + k, last_block), 0)

    moments = pl.pallas_call(
        kernel,
        out_shape=jax.ShapeDtypeStruct((n_chunks, 40, w), jnp.float32),
        grid_spec=pltpu.PrefetchScalarGridSpec(
            num_scalar_prefetch=0,
            grid=(n_chunks, n_steps),
            in_specs=[
                pl.BlockSpec((1, w), lambda c, k: (0, 0)),
                pl.BlockSpec((tile_rows, w), row_map),
                pl.BlockSpec((tile_rows, w), row_map),
            ],
            out_specs=pl.BlockSpec((1, 40, w), lambda c, k: (c, 0, 0)),
        ),
        compiler_params=pltpu.CompilerParams(
            dimension_semantics=("parallel", "arbitrary"),
            vmem_limit_bytes=vmem_limit,
        ),
    )(shift_lanes, p_packed, t_packed)

    # ---- finalize in plain JAX: fold chunks, sublanes and the r lane groups ----
    sums = moments.sum(axis=0).reshape(5, 8, r, t_dim).sum(axis=(1, 2))  # (5, T)
    inv_n = jnp.float32(1.0 / n)
    mean_p, mean_t = sums[0] * inv_n, sums[1] * inv_n     # means of shifted data
    var_p = sums[2] * inv_n - mean_p * mean_p
    var_t = sums[3] * inv_n - mean_t * mean_t
    cov = sums[4] * inv_n - mean_p * mean_t
    # TODO(synk): upstream CCC() helper not provided; this is Lin's CCC with
    # population (biased) moments.  Scale var/cov by n/(n-1) if upstream uses
    # unbiased torch.var.
    denom = var_p + var_t + (mean_p - mean_t) ** 2
    return 1.0 - 2.0 * cov / (denom + _EPS)


def _ccc_losses_jax(preds, targets):
    p = preds.astype(jnp.float32)
    t = targets.astype(jnp.float32)
    mp, mt = p.mean(0), t.mean(0)
    vp = ((p - mp) ** 2).mean(0)
    vt = ((t - mt) ** 2).mean(0)
    cov = ((p - mp) * (t - mt)).mean(0)
    return 1.0 - 2.0 * cov / (vp + vt + (mp - mt) ** 2 + _EPS)


def _ccc_losses_ref(preds, targets):
    return _ccc_losses_jax(preds.reshape(-1, preds.shape[-1]),
                           targets.reshape(-1, targets.shape[-1]))


def ccc_losses(preds, targets):
    """Dispatcher: pure JAX for tiny inputs, Pallas kernel otherwise."""
    preds = jnp.asarray(preds)
    targets = jnp.asarray(targets)
    assert preds.shape == targets.shape
    if preds.ndim > 2:
        preds = preds.reshape(-1, preds.shape[-1])
        targets = targets.reshape(-1, targets.shape[-1])
    if preds.size < _PALLAS_MIN_ELEMS:
        return _ccc_losses_jax(preds, targets)
    return ccc_losses_pallas(preds, targets)


# --------------------------- module-level glue ----------------------------- #

def dynamic_weight_average(num_tasks, kappa, temperature, loss_t1, loss_t2):
    if loss_t1 is None or loss_t2 is None:
        return jnp.ones((num_tasks,), dtype=jnp.float32)
    loss_t1 = jnp.asarray(loss_t1, dtype=jnp.float32)
    loss_t2 = jnp.asarray(loss_t2, dtype=jnp.float32)
    dl = loss_t1 / loss_t2
    return kappa * jax.nn.softmax(dl / temperature, axis=0)


def cross_entropy_loss(logits, labels):
    # TODO(synk): classification CE kept as plain-JAX glue (tiny op).
    logp = jax.nn.log_softmax(logits.astype(jnp.float32), axis=-1)
    nll = -jnp.take_along_axis(logp, labels.astype(jnp.int32)[:, None], axis=-1)
    return jnp.mean(nll)


class CCCLoss:
    """JAX/Pallas port of CCC_Loss (forward pass only)."""

    def __init__(self, num_targets, weight=None, reduction="mean"):
        self.num_targets = num_targets
        self.reduction = reduction
        self.phi = 1.0
        self.kappa = num_targets
        self.temperature = 10
        self.loss_t_1 = None
        self.loss_t_2 = None
        self.weight = None if weight is None else jnp.asarray(weight, jnp.float32)
        if reduction in ("rruw", "druw"):
            self.log_vars = jnp.ones((num_targets,), jnp.float32) / num_targets
        elif reduction not in ("mean", "dwa", "sum"):
            raise NotImplementedError(reduction)

    def __call__(self, preds, targets):
        assert preds.shape == targets.shape
        ccc_losses_t = ccc_losses(preds, targets)     # (T,)

        if self.reduction == "sum" and self.weight is not None:
            return jnp.sum(ccc_losses_t * self.weight)
        elif self.reduction in ("rruw", "druw"):
            un_weights = 1.0 / (self.num_targets * self.log_vars ** 2)
            regularisation = jnp.sum(jnp.log(1.0 + self.log_vars ** 2))
            constraint = jnp.abs(self.phi - jnp.sum(jnp.abs(self.log_vars)))
            if self.reduction == "rruw":
                return jnp.sum(un_weights * ccc_losses_t) + regularisation + constraint
            dyn_weights = dynamic_weight_average(
                self.num_targets, self.kappa, self.temperature,
                self.loss_t_1, self.loss_t_2)
            self.loss_t_2 = self.loss_t_1
            self.loss_t_1 = ccc_losses_t
            return (jnp.sum((dyn_weights + un_weights) * ccc_losses_t)
                    + regularisation + constraint)
        elif self.reduction == "dwa":
            dyn_weights = dynamic_weight_average(
                self.num_targets, self.kappa, self.temperature,
                self.loss_t_1, self.loss_t_2)
            self.loss_t_2 = self.loss_t_1
            self.loss_t_1 = ccc_losses_t
            return jnp.sum(dyn_weights * ccc_losses_t)
        else:  # 'mean'
            return jnp.mean(ccc_losses_t)


# TODO(synk): upstream DIMENSIONS / EMOTIONS / CULTURE_EMOTIONS constants were
# not provided; small deterministic stand-ins are used here.
DIMENSIONS = ["arousal", "valence"]
EMOTIONS = ["emotion_%d" % i for i in range(10)]
CULTURE_EMOTIONS = ["culture_emotion_%d" % i for i in range(6)]
NUM_VOC_TYPES = 8


class _Train:
    def __init__(self, loss_strategy):
        self.loss_strategy = loss_strategy


class Params:
    def __init__(self, loss_strategy="mean"):
        self.train = _Train(loss_strategy)


class Criterion:
    """Additive multi-task criterion (CE for classification, CCC for regression)."""

    def __init__(self, params):
        self.tasks = ["voc_type", "low", "high", "culture_emotion"]
        self.tasks_dict = {
            "voc_type": {"type": "classification"},
            "low": {"type": "regression", "dimensions": DIMENSIONS},
            "high": {"type": "regression", "dimensions": EMOTIONS},
            "culture_emotion": {"type": "regression", "dimensions": CULTURE_EMOTIONS},
        }
        self.params = params
        loss_strategy = params.train.loss_strategy
        self.losses = {}
        for t in self.tasks:
            if self.tasks_dict[t]["type"] == "classification":
                self.losses[t] = cross_entropy_loss
            else:
                # TODO(synk): the three regression tasks could be fused into a
                # single pallas_call by concatenating along the target dim when
                # their row counts match.
                self.losses[t] = CCCLoss(
                    num_targets=len(self.tasks_dict[t]["dimensions"]),
                    reduction=loss_strategy)

    def _task_pred_target(self, preds, targets, task_index, task):
        pred = preds[task] if isinstance(preds, dict) else preds[task_index]
        target = targets[task] if isinstance(targets, dict) else targets[task_index]
        return pred, target

    def __call__(self, preds, targets, return_all=True):
        task_losses = []
        for task_index, task in enumerate(self.tasks):
            pred, target = self._task_pred_target(preds, targets, task_index, task)
            task_losses.append(self.losses[task](pred, target))
        loss = jnp.mean(jnp.stack(task_losses))
        if return_all:
            # NOTE: float() mirrors torch .item() (host sync per task).
            return loss, {t: float(task_losses[i]) for i, t in enumerate(self.tasks)}
        return loss


class DynamicUncertaintyCriterion(Criterion):
    """Dynamic Restrained Uncertainty Weighting criterion (forward pass only)."""

    def __init__(self, params):
        super().__init__(params)
        n_tasks = len(self.tasks)
        self.log_vars = jnp.ones((n_tasks,), jnp.float32) / n_tasks
        self.phi = 1.0
        self.kappa = n_tasks
        self.temperature = 10
        self.loss_t_1 = None
        self.loss_t_2 = None

    def __call__(self, preds, targets, return_all=True):
        task_losses = []
        for task_index, task in enumerate(self.tasks):
            pred, target = self._task_pred_target(preds, targets, task_index, task)
            task_losses.append(self.losses[task](pred, target))
        loss_t = jnp.stack(task_losses)
        dyn_weights = dynamic_weight_average(
            num_tasks=len(self.tasks), kappa=self.kappa,
            temperature=self.temperature,
            loss_t1=self.loss_t_1, loss_t2=self.loss_t_2)
        un_weights = 1.0 / (len(self.tasks) * self.log_vars ** 2)
        regularisation = jnp.sum(jnp.log(1.0 + self.log_vars ** 2))
        constraint = jnp.abs(self.phi - jnp.sum(jnp.abs(self.log_vars)))
        loss = jnp.sum((dyn_weights + un_weights) * loss_t) + regularisation + constraint
        # NOTE: host-side Python state (mirrors the PyTorch module); not jit-safe.
        self.loss_t_2 = self.loss_t_1
        self.loss_t_1 = jax.lax.stop_gradient(loss_t)
        if return_all:
            return loss, {t: float(task_losses[i]) for i, t in enumerate(self.tasks)}
        return loss


# --------------------------------- demo ------------------------------------ #

if __name__ == "__main__":
    key = jax.random.PRNGKey(0)
    ks = jax.random.split(key, 16)

    # 1) validate the Pallas CCC kernel against a pure-JAX reference
    p32 = jax.random.normal(ks[0], (2, 8, 4), dtype=jnp.float32)
    t32 = jax.random.normal(ks[1], (2, 8, 4), dtype=jnp.float32)
    got = jax.block_until_ready(ccc_losses_pallas(p32, t32))
    ref = _ccc_losses_ref(p32, t32)
    assert jnp.allclose(got, ref, rtol=1e-4, atol=1e-4), (got, ref)

    # odd row / target counts with a large common offset (minimal-pad + mask path)
    p_odd = 2.5 + 0.1 * jax.random.normal(ks[2], (37, 3), dtype=jnp.float32)
    t_odd = 2.5 + 0.1 * jax.random.normal(ks[3], (37, 3), dtype=jnp.float32)
    got = jax.block_until_ready(ccc_losses_pallas(p_odd, t_odd))
    ref = _ccc_losses_ref(p_odd, t_odd)
    assert jnp.allclose(got, ref, rtol=1e-3, atol=1e-4), (got, ref)

    # bf16 inputs stay bf16 in HBM (zero-copy path); accumulation is f32 in-kernel
    p_bf = jax.random.normal(ks[4], (64, 4)).astype(jnp.bfloat16)
    t_bf = jax.random.normal(ks[5], (64, 4)).astype(jnp.bfloat16)
    got = jax.block_until_ready(ccc_losses_pallas(p_bf, t_bf))
    ref = _ccc_losses_ref(p_bf.astype(jnp.float32), t_bf.astype(jnp.float32))
    assert jnp.allclose(got, ref, rtol=1e-3, atol=1e-3), (got, ref)

    # multi-step / two-chunk accumulation, ragged-tail masking and block-index
    # clamping, zero-copy (N is a multiple of r so no pad is materialized)
    n_big = 1_200_000
    p_big = jax.random.normal(ks[6], (n_big, 4), dtype=jnp.float32)
    t_big = 0.5 * p_big + jax.random.normal(ks[7], (n_big, 4), dtype=jnp.float32)
    got = jax.block_until_ready(ccc_losses_pallas(p_big, t_big))
    ref = _ccc_losses_ref(p_big, t_big)
    assert jnp.allclose(got, ref, rtol=1e-3, atol=1e-3), (got, ref)

    # 2) full DynamicUncertaintyCriterion forward (batch=2, seq=8; small inputs
    #    dispatch to the pure-JAX CCC path to avoid per-task kernel launches)
    batch, seq = 2, 8
    preds = {
        "voc_type": jax.random.normal(ks[8], (batch * seq, NUM_VOC_TYPES), jnp.float32),
        "low": jax.random.normal(ks[9], (batch, seq, len(DIMENSIONS)), jnp.float32),
        "high": jax.random.normal(ks[10], (batch, seq, len(EMOTIONS)), jnp.float32),
        "culture_emotion": jax.random.normal(
            ks[11], (batch, seq, len(CULTURE_EMOTIONS)), jnp.float32),
    }
    targets = {
        "voc_type": jax.random.randint(ks[12], (batch * seq,), 0, NUM_VOC_TYPES),
        "low": jax.random.normal(ks[13], (batch, seq, len(DIMENSIONS)), jnp.float32),
        "high": jax.random.normal(ks[14], (batch, seq, len(EMOTIONS)), jnp.float32),
        "culture_emotion": jax.random.normal(
            ks[15], (batch, seq, len(CULTURE_EMOTIONS)), jnp.float32),
    }
    criterion = DynamicUncertaintyCriterion(Params(loss_strategy="mean"))
    loss, per_task = criterion(preds, targets, return_all=True)
    loss = jax.block_until_ready(loss)
    assert jnp.isfinite(loss), loss
    loss2 = criterion(preds, targets, return_all=False)   # exercises DWA state
    loss2 = jax.block_until_ready(loss2)
    assert jnp.isfinite(loss2), loss2

    print("KERNEL_OK")
</pallas_src>

<mosaic_0001>
module attributes {stable_mosaic.version = 11 : i64} {
  func.func @_ccc_moments_kernel(%arg0: i32, %arg1: i32, %arg2: memref<1x128xf32, #tpu.memory_space<vmem>>, %arg3: memref<16x128xf32, #tpu.memory_space<vmem>>, %arg4: memref<16x128xf32, #tpu.memory_space<vmem>>, %arg5: memref<1x40x128xf32, #tpu.memory_space<vmem>>) attributes {dimension_semantics = [#tpu.dimension_semantics<parallel>, #tpu.dimension_semantics<arbitrary>], iteration_bounds = array<i64: 1, 1>, scalar_prefetch = 0 : i64, scratch_operands = 0 : i64, tpu.core_type = #tpu.core_type<tc>, window_params = [{pipeline_mode = #tpu.pipeline_mode<synchronous>, transform_indices = @transform_0, window_bounds = array<i64: 1, 128>}, {transform_indices = @transform_1, window_bounds = array<i64: 16, 128>}, {transform_indices = @transform_2, window_bounds = array<i64: 16, 128>}, {transform_indices = @transform_3, window_bounds = array<i64: 1, 40, 128>}]} {
    %c0_i32 = arith.constant 0 : i32
    %0 = arith.cmpi eq, %arg1, %c0_i32 : i32
    %1 = arith.extui %0 : i1 to i32
    %c0_i32_0 = arith.constant 0 : i32
    %2 = arith.cmpi ne, %1, %c0_i32_0 : i32
    scf.if %2 {
      %cst_39 = arith.constant 0.000000e+00 : f32
      %69 = vector.broadcast %cst_39 : f32 to vector<1x40x128xf32>
      %c0_40 = arith.constant 0 : index
      %c0_41 = arith.constant 0 : index
      %c0_42 = arith.constant 0 : index
      %70 = vector.load %arg5[%c0_40, %c0_41, %c0_42] : memref<1x40x128xf32, #tpu.memory_space<vmem>>, vector<1x40x128xf32>
      tpu.vector_store %arg5[%c0_40, %c0_41, %c0_42], %69 {strides = array<i32>} : memref<1x40x128xf32, #tpu.memory_space<vmem>>, vector<1x40x128xf32>,
    } else {
    }
    %c0 = arith.constant 0 : index
    %c0_1 = arith.constant 0 : index
    %3 = vector.load %arg2[%c0, %c0_1] : memref<1x128xf32, #tpu.memory_space<vmem>>, vector<1x128xf32>
    %c0_2 = arith.constant 0 : index
    %c0_3 = arith.constant 0 : index
    %4 = vector.load %arg3[%c0_2, %c0_3] : memref<16x128xf32, #tpu.memory_space<vmem>>, vector<16x128xf32>
    %5 = vector.broadcast %3 : vector<1x128xf32> to vector<16x128xf32>
    %6 = arith.subf %4, %5 : vector<16x128xf32>
    %c0_4 = arith.constant 0 : index
    %c0_5 = arith.constant 0 : index
    %7 = vector.load %arg4[%c0_4, %c0_5] : memref<16x128xf32, #tpu.memory_space<vmem>>, vector<16x128xf32>
    %8 = vector.broadcast %3 : vector<1x128xf32> to vector<16x128xf32>
    %9 = arith.subf %7, %8 : vector<16x128xf32>
    %c1_i32 = arith.constant 1 : i32
    %10 = arith.muli %arg0, %c1_i32 : i32
    %11 = arith.addi %10, %arg1 : i32
    %c16_i32 = arith.constant 16 : i32
    %12 = arith.muli %11, %c16_i32 : i32
    %13 = tpu.iota {dimensions = array<i32: 0>} : vector<16x1xi32>
    %14 = vector.broadcast %12 : i32 to vector<16x1xi32>
    %15 = arith.addi %14, %13 : vector<16x1xi32>
    %c1_i32_6 = arith.constant 1 : i32
    %16 = vector.broadcast %c1_i32_6 : i32 to vector<16x1xi32>
    %17 = arith.cmpi slt, %15, %16 : vector<16x1xi32>
    %cst = arith.constant 0.000000e+00 : f32
    %18 = vector.shape_cast %17 : vector<16x1xi1> to vector<16x1xi1>
    %19 = vector.broadcast %18 : vector<16x1xi1> to vector<16x128xi1>
    %20 = vector.broadcast %cst : f32 to vector<16x128xf32>
    %21 = arith.select %19, %6, %20 : vector<16x128xi1>, vector<16x128xf32>
    %cst_7 = arith.constant 0.000000e+00 : f32
    %22 = vector.shape_cast %17 : vector<16x1xi1> to vector<16x1xi1>
    %23 = vector.broadcast %22 : vector<16x1xi1> to vector<16x128xi1>
    %24 = vector.broadcast %cst_7 : f32 to vector<16x128xf32>
    %25 = arith.select %23, %9, %24 : vector<16x128xi1>, vector<16x128xf32>
    %c0_8 = arith.constant 0 : index
    %c0_9 = arith.constant 0 : index
    %c0_10 = arith.constant 0 : index
    %26 = vector.load %arg5[%c0_8, %c0_9, %c0_10] : memref<1x40x128xf32, #tpu.memory_space<vmem>>, vector<1x8x128xf32>
    %27 = vector.shape_cast %26 : vector<1x8x128xf32> to vector<8x128xf32>
    %28 = vector.shape_cast %21 : vector<16x128xf32> to vector<2x8x128xf32>
    %cst_11 = arith.constant dense<0.000000e+00> : vector<8x128xf32>
    %29 = vector.multi_reduction <add>, %28, %cst_11 [0] : vector<2x8x128xf32> to vector<8x128xf32>
    %30 = arith.addf %27, %29 : vector<8x128xf32>
    %c0_12 = arith.constant 0 : index
    %c0_13 = arith.constant 0 : index
    %c0_14 = arith.constant 0 : index
    %31 = vector.load %arg5[%c0_12, %c0_13, %c0_14] : memref<1x40x128xf32, #tpu.memory_space<vmem>>, vector<1x8x128xf32>
    %32 = vector.shape_cast %31 : vector<1x8x128xf32> to vector<8x128xf32>
    %33 = vector.shape_cast %30 : vector<8x128xf32> to vector<1x8x128xf32>
    tpu.vector_store %arg5[%c0_12, %c0_13, %c0_14], %33 {strides = array<i32>} : memref<1x40x128xf32, #tpu.memory_space<vmem>>, vector<1x8x128xf32>,
    %c0_15 = arith.constant 0 : index
    %c8 = arith.constant 8 : index
    %c0_16 = arith.constant 0 : index
    %34 = vector.load %arg5[%c0_15, %c8, %c0_16] : memref<1x40x128xf32, #tpu.memory_space<vmem>>, vector<1x8x128xf32>
    %35 = vector.shape_cast %34 : vector<1x8x128xf32> to vector<8x128xf32>
    %36 = vector.shape_cast %25 : vector<16x128xf32> to vector<2x8x128xf32>
    %cst_17 = arith.constant dense<0.000000e+00> : vector<8x128xf32>
    %37 = vector.multi_reduction <add>, %36, %cst_17 [0] : vector<2x8x128xf32> to vector<8x128xf32>
    %38 = arith.addf %35, %37 : vector<8x128xf32>
    %c0_18 = arith.constant 0 : index
    %c8_19 = arith.constant 8 : index
    %c0_20 = arith.constant 0 : index
    %39 = vector.load %arg5[%c0_18, %c8_19, %c0_20] : memref<1x40x128xf32, #tpu.memory_space<vmem>>, vector<1x8x128xf32>
    %40 = vector.shape_cast %39 : vector<1x8x128xf32> to vector<8x128xf32>
    %41 = vector.shape_cast %38 : vector<8x128xf32> to vector<1x8x128xf32>
    tpu.vector_store %arg5[%c0_18, %c8_19, %c0_20], %41 {strides = array<i32>} : memref<1x40x128xf32, #tpu.memory_space<vmem>>, vector<1x8x128xf32>,
    %c0_21 = arith.constant 0 : index
    %c16 = arith.constant 16 : index
    %c0_22 = arith.constant 0 : index
    %42 = vector.load %arg5[%c0_21, %c16, %c0_22] : memref<1x40x128xf32, #tpu.memory_space<vmem>>, vector<1x8x128xf32>
    %43 = vector.shape_cast %42 : vector<1x8x128xf32> to vector<8x128xf32>
    %44 = arith.mulf %21, %21 : vector<16x128xf32>
    %45 = vector.shape_cast %44 : vector<16x128xf32> to vector<2x8x128xf32>
    %cst_23 = arith.constant dense<0.000000e+00> : vector<8x128xf32>
    %46 = vector.multi_reduction <add>, %45, %cst_23 [0] : vector<2x8x128xf32> to vector<8x128xf32>
    %47 = arith.addf %43, %46 : vector<8x128xf32>
    %c0_24 = arith.constant 0 : index
    %c16_25 = arith.constant 16 : index
    %c0_26 = arith.constant 0 : index
    %48 = vector.load %arg5[%c0_24, %c16_25, %c0_26] : memref<1x40x128xf32, #tpu.memory_space<vmem>>, vector<1x8x128xf32>
    %49 = vector.shape_cast %48 : vector<1x8x128xf32> to vector<8x128xf32>
    %50 = vector.shape_cast %47 : vector<8x128xf32> to vector<1x8x128xf32>
    tpu.vector_store %arg5[%c0_24, %c16_25, %c0_26], %50 {strides = array<i32>} : memref<1x40x128xf32, #tpu.memory_space<vmem>>, vector<1x8x128xf32>,
    %c0_27 = arith.constant 0 : index
    %c24 = arith.constant 24 : index
    %c0_28 = arith.constant 0 : index
    %51 = vector.load %arg5[%c0_27, %c24, %c0_28] : memref<1x40x128xf32, #tpu.memory_space<vmem>>, vector<1x8x128xf32>
    %52 = vector.shape_cast %51 : vector<1x8x128xf32> to vector<8x128xf32>
    %53 = arith.mulf %25, %25 : vector<16x128xf32>
    %54 = vector.shape_cast %53 : vector<16x128xf32> to vector<2x8x128xf32>
    %cst_29 = arith.constant dense<0.000000e+00> : vector<8x128xf32>
    %55 = vector.multi_reduction <add>, %54, %cst_29 [0] : vector<2x8x128xf32> to vector<8x128xf32>
    %56 = arith.addf %52, %55 : vector<8x128xf32>
    %c0_30 = arith.constant 0 : index
    %c24_31 = arith.constant 24 : index
    %c0_32 = arith.constant 0 : index
    %57 = vector.load %arg5[%c0_30, %c24_31, %c0_32] : memref<1x40x128xf32, #tpu.memory_space<vmem>>, vector<1x8x128xf32>
    %58 = vector.shape_cast %57 : vector<1x8x128xf32> to vector<8x128xf32>
    %59 = vector.shape_cast %56 : vector<8x128xf32> to vector<1x8x128xf32>
    tpu.vector_store %arg5[%c0_30, %c24_31, %c0_32], %59 {strides = array<i32>} : memref<1x40x128xf32, #tpu.memory_space<vmem>>, vector<1x8x128xf32>,
    %c0_33 = arith.constant 0 : index
    %c32 = arith.constant 32 : index
    %c0_34 = arith.constant 0 : index
    %60 = vector.load %arg5[%c0_33, %c32, %c0_34] : memref<1x40x128xf32, #tpu.memory_space<vmem>>, vector<1x8x128xf32>
    %61 = vector.shape_cast %60 : vector<1x8x128xf32> to vector<8x128xf32>
    %62 = arith.mulf %21, %25 : vector<16x128xf32>
    %63 = vector.shape_cast %62 : vector<16x128xf32> to vector<2x8x128xf32>
    %cst_35 = arith.constant dense<0.000000e+00> : vector<8x128xf32>
    %64 = vector.multi_reduction <add>, %63, %cst_35 [0] : vector<2x8x128xf32> to vector<8x128xf32>
    %65 = arith.addf %61, %64 : vector<8x128xf32>
    %c0_36 = arith.constant 0 : index
    %c32_37 = arith.constant 32 : index
    %c0_38 = arith.constant 0 : index
    %66 = vector.load %arg5[%c0_36, %c32_37, %c0_38] : memref<1x40x128xf32, #tpu.memory_space<vmem>>, vector<1x8x128xf32>
    %67 = vector.shape_cast %66 : vector<1x8x128xf32> to vector<8x128xf32>
    %68 = vector.shape_cast %65 : vector<8x128xf32> to vector<1x8x128xf32>
    tpu.vector_store %arg5[%c0_36, %c32_37, %c0_38], %68 {strides = array<i32>} : memref<1x40x128xf32, #tpu.memory_space<vmem>>, vector<1x8x128xf32>,
    return
  }
  func.func @transform_0(%arg0: i32, %arg1: i32) -> (i32, i32) {
    %c0_i32 = arith.constant 0 : i32
    %c0_i32_0 = arith.constant 0 : i32
    %c0_i32_1 = arith.constant 0 : i32
    return %c0_i32, %c0_i32_0 : i32, i32
  }
  func.func @transform_1(%arg0: i32, %arg1: i32) -> (i32, i32) {
    %c1_i32 = arith.constant 1 : i32
    %0 = arith.muli %arg0, %c1_i32 : i32
    %1 = arith.addi %0, %arg1 : i32
    %c0_i32 = arith.constant 0 : i32
    %2 = arith.minsi %1, %c0_i32 : i32
    %c0_i32_0 = arith.constant 0 : i32
    %c0_i32_1 = arith.constant 0 : i32
    return %2, %c0_i32_0 : i32, i32
  }
  func.func @transform_2(%arg0: i32, %arg1: i32) -> (i32, i32) {
    %c1_i32 = arith.constant 1 : i32
    %0 = arith.muli %arg0, %c1_i32 : i32
    %1 = arith.addi %0, %arg1 : i32
    %c0_i32 = arith.constant 0 : i32
    %2 = arith.minsi %1, %c0_i32 : i32
    %c0_i32_0 = arith.constant 0 : i32
    %c0_i32_1 = arith.constant 0 : i32
    return %2, %c0_i32_0 : i32, i32
  }
  func.func @transform_3(%arg0: i32, %arg1: i32) -> (i32, i32, i32) {
    %c0_i32 = arith.constant 0 : i32
    %c0_i32_0 = arith.constant 0 : i32
    %c0_i32_1 = arith.constant 0 : i32
    return %arg0, %c0_i32, %c0_i32_0 : i32, i32, i32
  }
}

</mosaic_0001>

<llo_original>
// kernel: tpu_custom_call.1
$region0: #{tpu_custom_call.1}
  #allocation0 [shape = 'u32[]', space=smem, size = 0x4, offset = 0x4, fixed_abs, tag = 'smem constant byte address 0x4 - core index']
  #allocation1 [shape = 'u32[144,128]{1,0:T(1,128)}', space=vmem, size = 0x12000, scoped, tag = 'internal scratch']
  %s0 = inlined_call_operand.hbm [shape: f32[1,128], index: 0, kind: input, shape index: {}]
  %s1 = inlined_call_operand.vmem [shape: f32[1,128], index: 1, kind: input, shape index: {}]
  %s2 = inlined_call_operand.vmem [shape: f32[1,128], index: 2, kind: input, shape index: {}]
  %s3 = inlined_call_operand.hbm [shape: f32[1,40,128], index: 3, kind: output, shape index: {}]
  %s4 = sld [smem:[#allocation0]]
  $region30: #{tpu_custom_call.1} parent=0
    _
  %s6 = ssub.s32 1, %s4
  %s7 = scalar_select 0, %s6, %s4
  $region1: #{tpu_custom_call.1} parent=0
    #allocation2 [shape = 'u8[512]{0}', space=vmem, size = 0x400, scoped, tag = 'input window, operand 0, single buffered']
    #allocation3 [shape = 's32[1]{0}', space=sflag, size = 0x4, scoped, tag = 'scoped memory for tpu_custom_call.1']
    #allocation4 [shape = 's32[1]{0}', space=sflag, size = 0x4, scoped, tag = 'scoped memory for tpu_custom_call.1']
    #allocation5 [shape = 'u8[20480]{0}', space=vmem, size = 0x5000, scoped, tag = 'output window, operand 0, single buffered']
    %8 = vsyncpa [#allocation3], 0
    %9 = vsyncpa [#allocation4], 0
    // Predicated region
    $region2: #{tpu_custom_call.1} parent=1 // pred_check
      _
    $region3: #{tpu_custom_call.1} parent=1 // pred_check_branch
      %11 = sbr.rel (0) target = $region5
    $region4: #{tpu_custom_call.1} parent=1 // pred_region
      %s13 = ssub.s32 16, 16
      %14 = vsyncadd [#allocation3], %s13
      %s16 = sshll.u32 [#allocation2], 4
      %s17 = int_to_ptr.vmem [resolvable:$true] %s16
      %19 = dma.hbm_to_vmem [thread:$0]  %s0, 16, %s17, [#allocation3]
    $region5: #{tpu_custom_call.1} parent=1 // pred_fallthru
      _
    // Predicated region
    $region6: #{tpu_custom_call.1} parent=1 // pred_check
      _
    $region7: #{tpu_custom_call.1} parent=1 // pred_check_branch
      %21 = sbr.rel (0) target = $region9
    $region8: #{tpu_custom_call.1} parent=1 // pred_region
      %s22 = sadd.s32 0, 0
      %p23 = scmp.lt.s32.totalorder %s22, 0
      %s24 = scalar_select %p23, %s22, 0
      %s25 = smul.u32 16, %s24
      %s26 = ssub.s32 1, %s25
      %s27 = smul.u32 16, %s26
      %p28 = scmp.lt.s32.totalorder %s25, 0
      %s29 = scalar_select %p28, %s25, 0
      %s30 = scalar_lea.vmem %s1, %s29
      %s31 = sadd.s32 0, 0
      %p32 = scmp.lt.s32.totalorder %s31, 0
      %s33 = scalar_select %p32, %s31, 0
      %s34 = smul.u32 16, %s33
      %s35 = ssub.s32 1, %s34
      %s36 = smul.u32 16, %s35
    $region9: #{tpu_custom_call.1} parent=1 // pred_fallthru
      _
    // Predicated region
    $region10: #{tpu_custom_call.1} parent=1 // pred_check
      _
    $region11: #{tpu_custom_call.1} parent=1 // pred_check_branch
      %38 = sbr.rel (0) target = $region13
    $region12: #{tpu_custom_call.1} parent=1 // pred_region
      %s39 = sadd.s32 0, 0
      %p40 = scmp.lt.s32.totalorder %s39, 0
      %s41 = scalar_select %p40, %s39, 0
      %s42 = smul.u32 16, %s41
      %s43 = ssub.s32 1, %s42
      %s44 = smul.u32 16, %s43
      %p45 = scmp.lt.s32.totalorder %s42, 0
      %s46 = scalar_select %p45, %s42, 0
      %s47 = scalar_lea.vmem %s2, %s46
      %s48 = sadd.s32 0, 0
      %p49 = scmp.lt.s32.totalorder %s48, 0
      %s50 = scalar_select %p49, %s48, 0
      %s51 = smul.u32 16, %s50
      %s52 = ssub.s32 1, %s51
      %s53 = smul.u32 16, %s52
    $region13: #{tpu_custom_call.1} parent=1 // pred_fallthru
      _
    // Predicated region
    $region14: #{tpu_custom_call.1} parent=1 // pred_check
      _
    $region15: #{tpu_custom_call.1} parent=1 // pred_check_branch
      %55 = sbr.rel (0) target = $region17
    $region16: #{tpu_custom_call.1} parent=1 // pred_region
      %56 = dma.done [#allocation3], 16
    $region17: #{tpu_custom_call.1} parent=1 // pred_fallthru
      _
    %s57 = sadd.s32 0, 0
    %p58 = scmp.lt.s32.totalorder %s57, 0
    %s59 = scalar_select %p58, %s57, 0
    %s60 = smul.u32 16, %s59
    %s61 = ssub.s32 1, %s60
    %s62 = smul.u32 16, %s61
    %p63 = scmp.lt.s32.totalorder %s60, 0
    %s64 = scalar_select %p63, %s60, 0
    %s65 = scalar_lea.vmem %s1, %s64
    %s66 = sadd.s32 0, 0
    %p67 = scmp.lt.s32.totalorder %s66, 0
    %s68 = scalar_select %p67, %s66, 0
    %s69 = smul.u32 16, %s68
    %s70 = ssub.s32 1, %s69
    %s71 = smul.u32 16, %s70
    %p72 = scmp.lt.s32.totalorder %s69, 0
    %s73 = scalar_select %p72, %s69, 0
    %s74 = scalar_lea.vmem %s2, %s73
    %s75 = sadd.s32 0, 0
    %p76 = scmp.lt.s32.totalorder %s75, 0
    %s77 = scalar_select %p76, %s75, 0
    %s78 = smul.u32 16, %s77
    %s79 = ssub.s32 1, %s78
    %s80 = smul.u32 16, %s79
    %p81 = scmp.lt.s32.totalorder %s78, 0
    %s82 = scalar_select %p81, %s78, 0
    %s83 = scalar_lea.vmem %s1, %s82
    %s84 = sadd.s32 0, 0
    %p85 = scmp.lt.s32.totalorder %s84, 0
    %s86 = scalar_select %p85, %s84, 0
    %s87 = smul.u32 16, %s86
    %s88 = ssub.s32 1, %s87
    %s89 = smul.u32 16, %s88
    %s90 = sadd.s32 0, 0
    %p91 = scmp.lt.s32.totalorder %s90, 0
    %s92 = scalar_select %p91, %s90, 0
    %s93 = smul.u32 16, %s92
    %s94 = ssub.s32 1, %s93
    %s95 = smul.u32 16, %s94
    %p96 = scmp.lt.s32.totalorder %s93, 0
    %s97 = scalar_select %p96, %s93, 0
    %s98 = scalar_lea.vmem %s2, %s97
    %s99 = sadd.s32 0, 0
    %p100 = scmp.lt.s32.totalorder %s99, 0
    %s101 = scalar_select %p100, %s99, 0
    %s102 = smul.u32 16, %s101
    %s103 = ssub.s32 1, %s102
    %s104 = smul.u32 16, %s103
    %p105 = scmp.eq.s32.totalorder 0, 0
    // Predicated region
    $region18: #{tpu_custom_call.1} parent=1 // pred_check
      %p106 = pneg %p105
    $region19: #{tpu_custom_call.1} parent=1 // pred_check_branch
      %108 = sbr.rel (%p106) target = $region21
    $region20: #{tpu_custom_call.1} parent=1 // pred_region
      %109 = vst [vmem:[#allocation5] sm:$0xff] 0.0
      %110 = vst [vmem:[#allocation5 + $0x8] sm:$0xff] 0.0
      %111 = vst [vmem:[#allocation5 + $0x10] sm:$0xff] 0.0
      %112 = vst [vmem:[#allocation5 + $0x18] sm:$0xff] 0.0
      %113 = vst [vmem:[#allocation5 + $0x20] sm:$0xff] 0.0
    $region21: #{tpu_custom_call.1} parent=1 // pred_fallthru
      _
    %v114 = vld [vmem:[#allocation2] sm:$0x1]
    %v115 = vld [vmem:[%s83] sm:$0xff]
    %v116 = vld [vmem:[%s83 + $0x8] sm:$0xff]
    %v118 = vlaneseq
    %v119 = vshrl.u32 %v118, 7
    %v120 = vsub.s32 0, %v119
    %v121 = vrot.slane %v114, %v120
    %v123 = vsub.f32 %v115, %v121
    %v124 = vsub.f32 %v116, %v121
    %v125 = vld [vmem:[%s98] sm:$0xff]
    %v126 = vld [vmem:[%s98 + $0x8] sm:$0xff]
    %v127 = vsub.f32 %v125, %v121
    %v128 = vsub.f32 %v126, %v121
    %s129 = sadd.s32 0, 0
    %s130 = smul.u32 %s129, 16
    %v131 = vlaneseq
    %v132 = vshrl.u32 %v131, 7
    %v133 = vadd.s32 %v132, 8
    %v134 = vstv %s130
    %v135 = vadd.s32 %v134, %v132
    %v136 = vadd.s32 %v134, %v133
    %vm137 = vcmp.lt.s32.totalorder %v135, 1
    %vm138 = vcmp.lt.s32.totalorder %v136, 1
    %v139 = vsel %vm137, 1, 0
    %v140 = vsel %vm138, 1, 0
    %vm141 = vcmp.eq.s32.totalorder %v139, 1
    %vm142 = vcmp.eq.s32.totalorder %v140, 1
    %v143 = vsel %vm141, %v123, 0.0
    %v144 = vsel %vm142, %v124, 0.0
    %v145 = vsel %vm141, %v127, 0.0
    %v146 = vsel %vm142, %v128, 0.0
    %v147 = vld [vmem:[#allocation5] sm:$0xff]
    %v148 = vadd.f32 %v143, %v144
    %v149 = vadd.f32 %v147, %v148
    %150 = vst [vmem:[#allocation5] sm:$0xff] %v149
    %v151 = vld [vmem:[#allocation5 + $0x8] sm:$0xff]
    %v152 = vadd.f32 %v145, %v146
    %v153 = vadd.f32 %v151, %v152
    %154 = vst [vmem:[#allocation5 + $0x8] sm:$0xff] %v153
    %v155 = vld [vmem:[#allocation5 + $0x10] sm:$0xff]
    %v156 = vmul.f32 %v143, %v143
    %v157 = vmul.f32 %v144, %v144
    %v158 = vadd.f32 %v156, %v157
    %v159 = vadd.f32 %v155, %v158
    %160 = vst [vmem:[#allocation5 + $0x10] sm:$0xff] %v159
    %v161 = vld [vmem:[#allocation5 + $0x18] sm:$0xff]
    %v162 = vmul.f32 %v145, %v145
    %v163 = vmul.f32 %v146, %v146
    %v164 = vadd.f32 %v162, %v163
    %v165 = vadd.f32 %v161, %v164
    %166 = vst [vmem:[#allocation5 + $0x18] sm:$0xff] %v165
    %v167 = vld [vmem:[#allocation5 + $0x20] sm:$0xff]
    %v168 = vmul.f32 %v143, %v145
    %v169 = vmul.f32 %v144, %v146
    %v170 = vadd.f32 %v168, %v169
    %v171 = vadd.f32 %v167, %v170
    %172 = vst [vmem:[#allocation5 + $0x20] sm:$0xff] %v171
    // Predicated region
    $region22: #{tpu_custom_call.1} parent=1 // pred_check
      _
    $region23: #{tpu_custom_call.1} parent=1 // pred_check_branch
      %174 = sbr.rel (0) target = $region25
    $region24: #{tpu_custom_call.1} parent=1 // pred_region
      %s176 = ssub.s32 640, 640
      %177 = vsyncadd [#allocation4], %s176
      %s178 = sshll.u32 [#allocation5], 4
      %s179 = int_to_ptr.vmem [resolvable:$true] %s178
      %184 = dma.vmem_to_hbm [thread:$0]  %s179, 640, %s3, [#allocation4], 128, 128, 8
    $region25: #{tpu_custom_call.1} parent=1 // pred_fallthru
      _
    // Predicated region
    $region26: #{tpu_custom_call.1} parent=1 // pred_check
      _
    $region27: #{tpu_custom_call.1} parent=1 // pred_check_branch
      %186 = sbr.rel (0) target = $region29
    $region28: #{tpu_custom_call.1} parent=1 // pred_region
      %187 = dma.done [#allocation4], 640
    $region29: #{tpu_custom_call.1} parent=1 // pred_fallthru
      _
    %188 = vsyncpa [#allocation3], 1
    %189 = vsyncpa [#allocation4], 1

</llo_original>
